<compile_context>
chip_gen: v7x
topology: tpu7x:2x2x1
jax: 0.10.0
libtpu: 0.0.40
codegen_flags: <defaults>
</compile_context>

<pallas_src>
import functools

import jax
import jax.numpy as jnp
from jax.experimental import pallas as pl
from jax.experimental.pallas import tpu as pltpu


def _se_attention_kernel(x_ref, w1_ref, w2_ref, o_ref, *, scale_in_input_dtype):
    # x_ref : (BT, C, HW)   w1_ref: (C, Cr)  (already scaled by 1/HW)
    # w2_ref: (Cr, C)       o_ref : (BT, C, HW)

    # --- squeeze: global average pool (f32 accumulate; 1/HW folded into W1) ----
    y = jnp.sum(x_ref[...].astype(jnp.float32), axis=-1)               # (BT, C)

    # --- excitation: Linear -> SiLU -> Linear -> Sigmoid (f32 GEMMs) -----------
    h = jnp.dot(y, w1_ref[...], preferred_element_type=jnp.float32)    # (BT, Cr)
    h = h * jax.nn.sigmoid(h)                                           # SiLU
    g = jax.nn.sigmoid(
        jnp.dot(h, w2_ref[...], preferred_element_type=jnp.float32))   # (BT, C)

    # --- scale: re-read x_ref (don't hold a full-block f32 temp across GEMMs) --
    if scale_in_input_dtype and jnp.dtype(o_ref.dtype) == jnp.dtype(jnp.bfloat16):
        gate = g.astype(jnp.bfloat16)                                   # tiny cast
        o_ref[...] = x_ref[...] * gate[:, :, None]
    else:
        o_ref[...] = (x_ref[...].astype(jnp.float32)
                      * g[:, :, None]).astype(o_ref.dtype)


def _chip_profile():
    """Per-generation budgets (block bytes, #TensorCores, VMEM cap, bf16 scale)."""
    kind = ""
    try:
        kind = jax.devices()[0].device_kind.lower()
    except Exception:
        pass
    if "7" in kind:                                   # v7x-class: 2 TCs, 64 MiB VMEM/TC
        return dict(block_budget=5 << 20, num_cores=2,
                    vmem_cap=64 << 20, bf16_scale=True)
    if "v5 lite" in kind or "v5e" in kind or "v5litepod" in kind:
        return dict(block_budget=12 << 20, num_cores=1,     # v5e: no bf16 VALU
                    vmem_cap=128 << 20, bf16_scale=False)
    # v6e (and sensible default for unknown single-core parts)
    return dict(block_budget=12 << 20, num_cores=1,
                vmem_cap=128 << 20, bf16_scale=True)


def _pick_batch_tile(b, budget_bt, num_cores):
    """Largest divisor of b that fits the byte budget and yields >= num_cores steps."""
    min_steps = num_cores if b >= num_cores else 1
    cap = max(1, min(budget_bt, b // min_steps))
    bt = 1
    for d in range(1, b + 1):
        if b % d == 0 and d <= cap:
            bt = d
    return bt


def se_attention(x_nchw, w1_t, w2_t):
    """x_nchw: (B, C, H, W); w1_t: (C, C//r); w2_t: (C//r, C). Returns (B, C, H, W)."""
    b, c, h, w = x_nchw.shape
    cr = w1_t.shape[1]
    hw = h * w
    itemsize = jnp.dtype(x_nchw.dtype).itemsize

    prof = _chip_profile()

    per_sample = c * hw * itemsize
    budget_bt = max(1, prof["block_budget"] // max(per_sample, 1))
    bt = _pick_batch_tile(b, budget_bt, prof["num_cores"])
    grid = (b // bt,)

    # Fold 1/(H*W) into W1 (exact: the scale is linear and applied before W1).
    w1_scaled = w1_t.astype(jnp.float32) * (1.0 / float(hw))
    w2_f = w2_t.astype(jnp.float32)

    # No padding / slicing: block covers the full (C, HW) extent, so the (8,128)
    # rule does not apply; the wrapper reshape is metadata-only (contiguous).
    x2 = x_nchw.reshape(b, c, hw)

    # VMEM budget from the actual footprint: double-buffered in + out blocks,
    # weights, plus headroom; clamp below the physical per-core VMEM.
    block_bytes = bt * c * hw * itemsize
    weight_bytes = (w1_scaled.size + w2_f.size) * 4
    vmem_needed = 4 * block_bytes + 2 * weight_bytes + (4 << 20)
    vmem_limit = int(min(max(vmem_needed, 16 << 20), prof["vmem_cap"] - (4 << 20)))

    cost = pl.CostEstimate(
        flops=4 * b * c * cr + 2 * b * c * hw,
        transcendentals=b * (cr + c),
        bytes_accessed=2 * b * c * hw * itemsize + weight_bytes,
    )

    out = pl.pallas_call(
        functools.partial(_se_attention_kernel,
                          scale_in_input_dtype=prof["bf16_scale"]),
        out_shape=jax.ShapeDtypeStruct((b, c, hw), x2.dtype),
        grid_spec=pltpu.PrefetchScalarGridSpec(
            num_scalar_prefetch=0,
            grid=grid,
            in_specs=[
                pl.BlockSpec((bt, c, hw), lambda i: (i, 0, 0)),   # x batch tile
                pl.BlockSpec((c, cr), lambda i: (0, 0)),          # W1^T * 1/HW (full)
                pl.BlockSpec((cr, c), lambda i: (0, 0)),          # W2^T (full)
            ],
            out_specs=pl.BlockSpec((bt, c, hw), lambda i: (i, 0, 0)),
        ),
        compiler_params=pltpu.CompilerParams(
            dimension_semantics=("parallel",),
            vmem_limit_bytes=vmem_limit,
        ),
        cost_estimate=cost,
    )(x2, w1_scaled, w2_f)

    return out.reshape(b, c, h, w)


def _reference(x, w1_t, w2_t):
    y = jnp.mean(x.astype(jnp.float32), axis=(2, 3))        # (B, C)
    hh = y @ w1_t.astype(jnp.float32)
    hh = hh * jax.nn.sigmoid(hh)                             # SiLU
    g = jax.nn.sigmoid(hh @ w2_t.astype(jnp.float32))        # (B, C)
    return (x.astype(jnp.float32) * g[:, :, None, None]).astype(x.dtype)


if __name__ == "__main__":
    # Small shapes consistent with the module: channels divisible by reduction=16.
    B, C, REDUCTION = 2, 64, 16
    CR = C // REDUCTION

    key = jax.random.PRNGKey(0)
    kx, k1, k2, kx2, kx3 = jax.random.split(key, 5)

    # Torch nn.Linear(C, CR, bias=False).weight has shape (CR, C); forward is y @ W.T.
    # We store the transposed weights directly (deterministic synthetic init).
    w1 = jax.random.normal(k1, (CR, C), dtype=jnp.float32) * (1.0 / jnp.sqrt(C))
    w2 = jax.random.normal(k2, (C, CR), dtype=jnp.float32) * (1.0 / jnp.sqrt(CR))
    w1_t = w1.T    # (C, CR)
    w2_t = w2.T    # (CR, C)

    # 1) Main run: 16x16 spatial (HW = 256, lane-aligned), f32.
    x = jax.random.normal(kx, (B, C, 16, 16), dtype=jnp.float32)
    out = jax.block_until_ready(se_attention(x, w1_t, w2_t))
    ref = _reference(x, w1_t, w2_t)
    assert out.shape == x.shape
    assert jnp.allclose(out, ref, atol=1e-5, rtol=1e-5), "mismatch vs reference (16x16 f32)"

    # 2) Non-128-aligned spatial path (HW = 196), no wrapper padding.
    x14 = jax.random.normal(kx2, (B, C, 14, 14), dtype=jnp.float32)
    out14 = jax.block_until_ready(se_attention(x14, w1_t, w2_t))
    ref14 = _reference(x14, w1_t, w2_t)
    assert out14.shape == x14.shape
    assert jnp.allclose(out14, ref14, atol=1e-5, rtol=1e-5), "mismatch vs reference (14x14 f32)"

    # 3) bf16 input (exercises the input-dtype scale path on v6e/v7x).
    xb = jax.random.normal(kx3, (B, C, 16, 16), dtype=jnp.float32).astype(jnp.bfloat16)
    outb = jax.block_until_ready(se_attention(xb, w1_t, w2_t))
    refb = _reference(xb, w1_t, w2_t)
    assert outb.shape == xb.shape
    assert jnp.allclose(outb.astype(jnp.float32), refb.astype(jnp.float32),
                        atol=2e-2, rtol=2e-2), "mismatch vs reference (16x16 bf16)"

    print("KERNEL_OK")
</pallas_src>

<mosaic_0001>
module attributes {stable_mosaic.version = 11 : i64} {
  func.func @_se_attention_kernel(%arg0: i32, %arg1: memref<2x64x256xf32, #tpu.memory_space<vmem>>, %arg2: memref<64x4xf32, #tpu.memory_space<vmem>>, %arg3: memref<4x64xf32, #tpu.memory_space<vmem>>, %arg4: memref<2x64x256xf32, #tpu.memory_space<vmem>>) attributes {dimension_semantics = [#tpu.dimension_semantics<parallel>], iteration_bounds = array<i64: 1>, scalar_prefetch = 0 : i64, scratch_operands = 0 : i64, tpu.core_type = #tpu.core_type<tc>, window_params = [{transform_indices = @transform_0, window_bounds = array<i64: 2, 64, 256>}, {pipeline_mode = #tpu.pipeline_mode<synchronous>, transform_indices = @transform_1, window_bounds = array<i64: 64, 4>}, {pipeline_mode = #tpu.pipeline_mode<synchronous>, transform_indices = @transform_2, window_bounds = array<i64: 4, 64>}, {transform_indices = @transform_3, window_bounds = array<i64: 2, 64, 256>}]} {
    %c0 = arith.constant 0 : index
    %c0_0 = arith.constant 0 : index
    %c0_1 = arith.constant 0 : index
    %0 = vector.load %arg1[%c0, %c0_0, %c0_1] : memref<2x64x256xf32, #tpu.memory_space<vmem>>, vector<2x64x256xf32>
    %cst = arith.constant dense<0.000000e+00> : vector<2x64xf32>
    %1 = vector.multi_reduction <add>, %0, %cst [2] : vector<2x64x256xf32> to vector<2x64xf32>
    %c0_2 = arith.constant 0 : index
    %c0_3 = arith.constant 0 : index
    %2 = vector.load %arg2[%c0_2, %c0_3] : memref<64x4xf32, #tpu.memory_space<vmem>>, vector<64x4xf32>
    %cst_4 = arith.constant dense<0.000000e+00> : vector<2x4xf32>
    %3 = tpu.matmul %1, %2, %cst_4 {dimension_numbers = #tpu.dot_dimension_numbers<[1], [0], [0], [1], [0, 0, 1, 1], [], []>} : vector<2x64xf32>, vector<64x4xf32>, vector<2x4xf32> -> vector<2x4xf32>
    %4 = arith.negf %3 : vector<2x4xf32>
    %5 = math.exp %4 : vector<2x4xf32>
    %cst_5 = arith.constant 1.000000e+00 : f32
    %6 = vector.broadcast %cst_5 : f32 to vector<2x4xf32>
    %7 = arith.addf %6, %5 : vector<2x4xf32>
    %8 = arith.divf %6, %7 : vector<2x4xf32>
    %9 = arith.mulf %3, %8 : vector<2x4xf32>
    %c0_6 = arith.constant 0 : index
    %c0_7 = arith.constant 0 : index
    %10 = vector.load %arg3[%c0_6, %c0_7] : memref<4x64xf32, #tpu.memory_space<vmem>>, vector<4x64xf32>
    %cst_8 = arith.constant dense<0.000000e+00> : vector<2x64xf32>
    %11 = tpu.matmul %9, %10, %cst_8 {dimension_numbers = #tpu.dot_dimension_numbers<[1], [0], [0], [1], [0, 0, 1, 1], [], []>} : vector<2x4xf32>, vector<4x64xf32>, vector<2x64xf32> -> vector<2x64xf32>
    %12 = arith.negf %11 : vector<2x64xf32>
    %13 = math.exp %12 : vector<2x64xf32>
    %cst_9 = arith.constant 1.000000e+00 : f32
    %14 = vector.broadcast %cst_9 : f32 to vector<2x64xf32>
    %15 = arith.addf %14, %13 : vector<2x64xf32>
    %16 = arith.divf %14, %15 : vector<2x64xf32>
    %c0_10 = arith.constant 0 : index
    %c0_11 = arith.constant 0 : index
    %c0_12 = arith.constant 0 : index
    %17 = vector.load %arg1[%c0_10, %c0_11, %c0_12] : memref<2x64x256xf32, #tpu.memory_space<vmem>>, vector<2x64x256xf32>
    %18 = vector.shape_cast %16 : vector<2x64xf32> to vector<2x64x1xf32>
    %19 = vector.broadcast %18 : vector<2x64x1xf32> to vector<2x64x256xf32>
    %20 = arith.mulf %17, %19 : vector<2x64x256xf32>
    %c0_13 = arith.constant 0 : index
    %c0_14 = arith.constant 0 : index
    %c0_15 = arith.constant 0 : index
    %21 = vector.load %arg4[%c0_13, %c0_14, %c0_15] : memref<2x64x256xf32, #tpu.memory_space<vmem>>, vector<2x64x256xf32>
    tpu.vector_store %arg4[%c0_13, %c0_14, %c0_15], %20 {strides = array<i32>} : memref<2x64x256xf32, #tpu.memory_space<vmem>>, vector<2x64x256xf32>,
    return
  }
  func.func @transform_0(%arg0: i32) -> (i32, i32, i32) {
    %c0_i32 = arith.constant 0 : i32
    %c0_i32_0 = arith.constant 0 : i32
    %c0_i32_1 = arith.constant 0 : i32
    return %arg0, %c0_i32, %c0_i32_0 : i32, i32, i32
  }
  func.func @transform_1(%arg0: i32) -> (i32, i32) {
    %c0_i32 = arith.constant 0 : i32
    %c0_i32_0 = arith.constant 0 : i32
    %c0_i32_1 = arith.constant 0 : i32
    return %c0_i32, %c0_i32_0 : i32, i32
  }
  func.func @transform_2(%arg0: i32) -> (i32, i32) {
    %c0_i32 = arith.constant 0 : i32
    %c0_i32_0 = arith.constant 0 : i32
    %c0_i32_1 = arith.constant 0 : i32
    return %c0_i32, %c0_i32_0 : i32, i32
  }
  func.func @transform_3(%arg0: i32) -> (i32, i32, i32) {
    %c0_i32 = arith.constant 0 : i32
    %c0_i32_0 = arith.constant 0 : i32
    %c0_i32_1 = arith.constant 0 : i32
    return %arg0, %c0_i32, %c0_i32_0 : i32, i32, i32
  }
}

</mosaic_0001>

<llo_original>
// kernel: tpu_custom_call.1
$region0: #{tpu_custom_call.1}
  #allocation0 [shape = 'u32[]', space=smem, size = 0x4, offset = 0x4, fixed_abs, tag = 'smem constant byte address 0x4 - core index']
  #allocation1 [shape = 'u32[144,128]{1,0:T(1,128)}', space=vmem, size = 0x12000, scoped, tag = 'internal scratch']
  %s0 = inlined_call_operand.hbm [shape: f32[2,64,256], index: 0, kind: input, shape index: {}]
  %s1 = inlined_call_operand.vmem [shape: f32[64,4], index: 1, kind: input, shape index: {}]
  %s2 = inlined_call_operand.vmem [shape: f32[4,64], index: 2, kind: input, shape index: {}]
  %s3 = inlined_call_operand.hbm [shape: f32[2,64,256], index: 3, kind: output, shape index: {}]
  %s4 = sld [smem:[#allocation0]]
  $region26: #{tpu_custom_call.1} parent=0
    _
  %s6 = ssub.s32 1, %s4
  %s7 = scalar_select 0, %s6, %s4
  $region1: #{tpu_custom_call.1} parent=0
    #allocation2 [shape = 'u8[131072]{0}', space=vmem, size = 0x20000, scoped, tag = 'input window, operand 0, single buffered']
    #allocation3 [shape = 's32[1]{0}', space=sflag, size = 0x4, scoped, tag = 'scoped memory for tpu_custom_call.1']
    #allocation4 [shape = 's32[1]{0}', space=sflag, size = 0x4, scoped, tag = 'scoped memory for tpu_custom_call.1']
    #allocation5 [shape = 'u8[131072]{0}', space=vmem, size = 0x20000, scoped, tag = 'output window, operand 0, single buffered']
    %8 = vsyncpa [#allocation3], 0
    %9 = vsyncpa [#allocation4], 0
    // Predicated region
    $region2: #{tpu_custom_call.1} parent=1 // pred_check
      _
    $region3: #{tpu_custom_call.1} parent=1 // pred_check_branch
      %11 = sbr.rel (0) target = $region5
    $region4: #{tpu_custom_call.1} parent=1 // pred_region
      %s13 = ssub.s32 4096, 4096
      %14 = vsyncadd [#allocation3], %s13
      %s15 = sshll.u32 [#allocation2], 4
      %s16 = int_to_ptr.vmem [resolvable:$true] %s15
      %21 = dma.hbm_to_vmem [thread:$0]  %s0, 4096, %s16, [#allocation3], 256, 256, 16
    $region5: #{tpu_custom_call.1} parent=1 // pred_fallthru
      _
    // Predicated region
    $region6: #{tpu_custom_call.1} parent=1 // pred_check
      _
    $region7: #{tpu_custom_call.1} parent=1 // pred_check_branch
      %23 = sbr.rel (0) target = $region9
    $region8: #{tpu_custom_call.1} parent=1 // pred_region
      _
    $region9: #{tpu_custom_call.1} parent=1 // pred_fallthru
      _
    // Predicated region
    $region10: #{tpu_custom_call.1} parent=1 // pred_check
      _
    $region11: #{tpu_custom_call.1} parent=1 // pred_check_branch
      %25 = sbr.rel (0) target = $region13
    $region12: #{tpu_custom_call.1} parent=1 // pred_region
      _
    $region13: #{tpu_custom_call.1} parent=1 // pred_fallthru
      _
    // Predicated region
    $region14: #{tpu_custom_call.1} parent=1 // pred_check
      _
    $region15: #{tpu_custom_call.1} parent=1 // pred_check_branch
      %27 = sbr.rel (0) target = $region17
    $region16: #{tpu_custom_call.1} parent=1 // pred_region
      %28 = dma.done [#allocation3], 4096
    $region17: #{tpu_custom_call.1} parent=1 // pred_fallthru
      _
    %v29 = vld [vmem:[#allocation2] sm:$0xff]
    %v30 = vld [vmem:[#allocation2 + $0x8] sm:$0xff]
    %v31 = vld [vmem:[#allocation2 + $0x10] sm:$0xff]
    %v32 = vld [vmem:[#allocation2 + $0x18] sm:$0xff]
    %v33 = vld [vmem:[#allocation2 + $0x20] sm:$0xff]
    %v34 = vld [vmem:[#allocation2 + $0x28] sm:$0xff]
    %v35 = vld [vmem:[#allocation2 + $0x30] sm:$0xff]
    %v36 = vld [vmem:[#allocation2 + $0x38] sm:$0xff]
    %v37 = vld [vmem:[#allocation2 + $0x40] sm:$0xff]
    %v38 = vld [vmem:[#allocation2 + $0x48] sm:$0xff]
    %v39 = vld [vmem:[#allocation2 + $0x50] sm:$0xff]
    %v40 = vld [vmem:[#allocation2 + $0x58] sm:$0xff]
    %v41 = vld [vmem:[#allocation2 + $0x60] sm:$0xff]
    %v42 = vld [vmem:[#allocation2 + $0x68] sm:$0xff]
    %v43 = vld [vmem:[#allocation2 + $0x70] sm:$0xff]
    %v44 = vld [vmem:[#allocation2 + $0x78] sm:$0xff]
    %v45 = vld [vmem:[#allocation2 + $0x80] sm:$0xff]
    %v46 = vld [vmem:[#allocation2 + $0x88] sm:$0xff]
    %v47 = vld [vmem:[#allocation2 + $0x90] sm:$0xff]
    %v48 = vld [vmem:[#allocation2 + $0x98] sm:$0xff]
    %v49 = vld [vmem:[#allocation2 + $0xa0] sm:$0xff]
    %v50 = vld [vmem:[#allocation2 + $0xa8] sm:$0xff]
    %v51 = vld [vmem:[#allocation2 + $0xb0] sm:$0xff]
    %v52 = vld [vmem:[#allocation2 + $0xb8] sm:$0xff]
    %v53 = vld [vmem:[#allocation2 + $0xc0] sm:$0xff]
    %v54 = vld [vmem:[#allocation2 + $0xc8] sm:$0xff]
    %v55 = vld [vmem:[#allocation2 + $0xd0] sm:$0xff]
    %v56 = vld [vmem:[#allocation2 + $0xd8] sm:$0xff]
    %v57 = vld [vmem:[#allocation2 + $0xe0] sm:$0xff]
    %v58 = vld [vmem:[#allocation2 + $0xe8] sm:$0xff]
    %v59 = vld [vmem:[#allocation2 + $0xf0] sm:$0xff]
    %v60 = vld [vmem:[#allocation2 + $0xf8] sm:$0xff]
    %v61 = vadd.f32 %v29, %v30
    %62 = vadd.xlane.f32.xlu0 %v61
    %v63 = vpop.xlane.xlu0 %62
    %v64 = vadd.f32 %v31, %v32
    %65 = vadd.xlane.f32.xlu0 %v64
    %v66 = vpop.xlane.xlu0 %65
    %v67 = vadd.f32 %v33, %v34
    %68 = vadd.xlane.f32.xlu0 %v67
    %v69 = vpop.xlane.xlu0 %68
    %v70 = vadd.f32 %v35, %v36
    %71 = vadd.xlane.f32.xlu0 %v70
    %v72 = vpop.xlane.xlu0 %71
    %v73 = vadd.f32 %v37, %v38
    %74 = vadd.xlane.f32.xlu0 %v73
    %v75 = vpop.xlane.xlu0 %74
    %v76 = vadd.f32 %v39, %v40
    %77 = vadd.xlane.f32.xlu0 %v76
    %v78 = vpop.xlane.xlu0 %77
    %v79 = vadd.f32 %v41, %v42
    %80 = vadd.xlane.f32.xlu0 %v79
    %v81 = vpop.xlane.xlu0 %80
    %v82 = vadd.f32 %v43, %v44
    %83 = vadd.xlane.f32.xlu0 %v82
    %v84 = vpop.xlane.xlu0 %83
    %v85 = vadd.f32 %v45, %v46
    %86 = vadd.xlane.f32.xlu0 %v85
    %v87 = vpop.xlane.xlu0 %86
    %v88 = vadd.f32 %v47, %v48
    %89 = vadd.xlane.f32.xlu0 %v88
    %v90 = vpop.xlane.xlu0 %89
    %v91 = vadd.f32 %v49, %v50
    %92 = vadd.xlane.f32.xlu0 %v91
    %v93 = vpop.xlane.xlu0 %92
    %v94 = vadd.f32 %v51, %v52
    %95 = vadd.xlane.f32.xlu0 %v94
    %v96 = vpop.xlane.xlu0 %95
    %v97 = vadd.f32 %v53, %v54
    %98 = vadd.xlane.f32.xlu0 %v97
    %v99 = vpop.xlane.xlu0 %98
    %v100 = vadd.f32 %v55, %v56
    %101 = vadd.xlane.f32.xlu0 %v100
    %v102 = vpop.xlane.xlu0 %101
    %v103 = vadd.f32 %v57, %v58
    %104 = vadd.xlane.f32.xlu0 %v103
    %v105 = vpop.xlane.xlu0 %104
    %v106 = vadd.f32 %v59, %v60
    %107 = vadd.xlane.f32.xlu0 %v106
    %v108 = vpop.xlane.xlu0 %107
    %v109 = vld [vmem:[%s1] sm:$0xff]
    %v110 = vld [vmem:[%s1 + $0x8] sm:$0xff]
    %v111 = vld [vmem:[%s1 + $0x10] sm:$0xff]
    %v112 = vld [vmem:[%s1 + $0x18] sm:$0xff]
    %v113 = vld [vmem:[%s1 + $0x20] sm:$0xff]
    %v114 = vld [vmem:[%s1 + $0x28] sm:$0xff]
    %v115 = vld [vmem:[%s1 + $0x30] sm:$0xff]
    %v116 = vld [vmem:[%s1 + $0x38] sm:$0xff]
    %v133 = vlaneseq
    %v134 = vand.u32 %v133, 127
    %v135 = vlaneseq
    %v136 = vshrl.u32 %v135, 7
    %v137 = vsub.s32 %v134, %v136
    %v138 = vrot.slane %v63, %v137
    %v139 = vadd.s32 %v134, 4294967288
    %v140 = vlaneseq
    %v141 = vshrl.u32 %v140, 7
    %v142 = vsub.s32 %v139, %v141
    %v143 = vrot.slane %v66, %v142
    %vm144 = vcmask 130112
    %v145 = vsel %vm144, %v143, %v138
    %v146 = vadd.s32 %v134, 4294967280
    %v147 = vlaneseq
    %v148 = vshrl.u32 %v147, 7
    %v149 = vsub.s32 %v146, %v148
    %v150 = vrot.slane %v69, %v149
    %vm151 = vcmask 195712
    %v152 = vsel %vm151, %v150, %v145
    %v153 = vadd.s32 %v134, 4294967272
    %v154 = vlaneseq
    %v155 = vshrl.u32 %v154, 7
    %v156 = vsub.s32 %v153, %v155
    %v157 = vrot.slane %v72, %v156
    %vm158 = vcmask 261312
    %v159 = vsel %vm158, %v157, %v152
    %v160 = vadd.s32 %v134, 4294967264
    %v161 = vlaneseq
    %v162 = vshrl.u32 %v161, 7
    %v163 = vsub.s32 %v160, %v162
    %v164 = vrot.slane %v75, %v163
    %vm165 = vcmask 326912
    %v166 = vsel %vm165, %v164, %v159
    %v167 = vadd.s32 %v134, 4294967256
    %v168 = vlaneseq
    %v169 = vshrl.u32 %v168, 7
    %v170 = vsub.s32 %v167, %v169
    %v171 = vrot.slane %v78, %v170
    %vm172 = vcmask 392512
    %v173 = vsel %vm172, %v171, %v166
    %v174 = vadd.s32 %v134, 4294967248
    %v175 = vlaneseq
    %v176 = vshrl.u32 %v175, 7
    %v177 = vsub.s32 %v174, %v176
    %v178 = vrot.slane %v81, %v177
    %vm179 = vcmask 458112
    %v180 = vsel %vm179, %v178, %v173
    %v181 = vadd.s32 %v134, 4294967240
    %v182 = vlaneseq
    %v183 = vshrl.u32 %v182, 7
    %v184 = vsub.s32 %v181, %v183
    %v185 = vrot.slane %v84, %v184
    %vm186 = vcmask 523712
    %v187 = vsel %vm186, %v185, %v180
    %v188 = vlaneseq
    %v189 = vshrl.u32 %v188, 7
    %v190 = vsub.s32 %v134, %v189
    %v191 = vrot.slane %v87, %v190
    %v192 = vlaneseq
    %v193 = vshrl.u32 %v192, 7
    %v194 = vsub.s32 %v139, %v193
    %v195 = vrot.slane %v90, %v194
    %v196 = vsel %vm144, %v195, %v191
    %v197 = vlaneseq
    %v198 = vshrl.u32 %v197, 7
    %v199 = vsub.s32 %v146, %v198
    %v200 = vrot.slane %v93, %v199
    %v201 = vsel %vm151, %v200, %v196
    %v202 = vlaneseq
    %v203 = vshrl.u32 %v202, 7
    %v204 = vsub.s32 %v153, %v203
    %v205 = vrot.slane %v96, %v204
    %v206 = vsel %vm158, %v205, %v201
    %v207 = vlaneseq
    %v208 = vshrl.u32 %v207, 7
    %v209 = vsub.s32 %v160, %v208
    %v210 = vrot.slane %v99, %v209
    %v211 = vsel %vm165, %v210, %v206
    %v212 = vlaneseq
    %v213 = vshrl.u32 %v212, 7
    %v214 = vsub.s32 %v167, %v213
    %v215 = vrot.slane %v102, %v214
    %v216 = vsel %vm172, %v215, %v211
    %v217 = vlaneseq
    %v218 = vshrl.u32 %v217, 7
    %v219 = vsub.s32 %v174, %v218
    %v220 = vrot.slane %v105, %v219
    %v221 = vsel %vm179, %v220, %v216
    %v222 = vlaneseq
    %v223 = vshrl.u32 %v222, 7
    %v224 = vsub.s32 %v181, %v223
    %v225 = vrot.slane %v108, %v224
    %v226 = vsel %vm186, %v225, %v221
    %vm227 = vcmask 1041409
    %v228 = vsel %vm227, %v226, %v187
    %vm229 = vcmask 523264
    %v230 = vsel %vm229, %v228, 0
    %232 = vmatprep.subr.mxu0 0.0
    %233 = vmatpush1.msra.mxu0 %v109
    %234 = vmatprep.subr.mxu0 0.0
    %235 = vmatpush1.msra.mxu0 %v110
    %236 = vmatprep.subr.mxu0 0.0
    %237 = vmatpush1.msra.mxu0 %v111
    %238 = vmatprep.subr.mxu0 0.0
    %239 = vmatpush1.msra.mxu0 %v112
    %240 = vmatprep.subr.mxu0 0.0
    %241 = vmatpush1.msra.mxu0 %v113
    %242 = vmatprep.subr.mxu0 0.0
    %243 = vmatpush1.msra.mxu0 %v114
    %244 = vmatprep.subr.mxu0 0.0
    %245 = vmatpush1.msra.mxu0 %v115
    %246 = vmatprep.subr.mxu0 0.0
    %247 = vmatpush1.msra.mxu0 %v116
    %248 = vmatprep.subr.mxu0 0.0
    %249 = vmatpush1.msra.mxu0 0.0
    %250 = vmatprep.subr.mxu0 0.0
    %251 = vmatpush1.msra.mxu0 0.0
    %252 = vmatprep.subr.mxu0 0.0
    %253 = vmatpush1.msra.mxu0 0.0
    %254 = vmatprep.subr.mxu0 0.0
    %255 = vmatpush1.msra.mxu0 0.0
    %256 = vmatprep.subr.mxu0 0.0
    %257 = vmatpush1.msra.mxu0 0.0
    %258 = vmatprep.subr.mxu0 0.0
    %259 = vmatpush1.msra.mxu0 0.0
    %260 = vmatprep.subr.mxu0 0.0
    %261 = vmatpush1.msra.mxu0 0.0
    %262 = vmatprep.subr.mxu0 0.0
    %263 = vmatpush1.msra.mxu0 0.0
    %264 = vmatprep.subr.mxu0 0.0
    %265 = vmatpush1.msra.mxu0 0.0
    %266 = vmatprep.subr.mxu0 0.0
    %267 = vmatpush1.msra.mxu0 0.0
    %268 = vmatprep.subr.mxu0 0.0
    %269 = vmatpush1.msra.mxu0 0.0
    %270 = vmatprep.subr.mxu0 0.0
    %271 = vmatpush1.msra.mxu0 0.0
    %272 = vmatprep.subr.mxu0 0.0
    %273 = vmatpush1.msra.mxu0 0.0
    %274 = vmatprep.subr.mxu0 0.0
    %275 = vmatpush1.msra.mxu0 0.0
    %276 = vmatprep.subr.mxu0 0.0
    %277 = vmatpush1.msra.mxu0 0.0
    %278 = vmatprep.subr.mxu0 0.0
    %279 = vmatpush1.msra.mxu0 0.0
    %280 = vmatprep.subr.mxu0 0.0
    %281 = vmatpush1.msra.mxu0 0.0
    %282 = vmatprep.subr.mxu0 0.0
    %283 = vmatpush1.msra.mxu0 0.0
    %284 = vmatprep.subr.mxu0 0.0
    %285 = vmatpush1.msra.mxu0 0.0
    %286 = vmatprep.subr.mxu0 0.0
    %287 = vmatpush1.msra.mxu0 0.0
    %288 = vmatprep.subr.mxu0 0.0
    %289 = vmatpush1.msra.mxu0 0.0
    %290 = vmatprep.subr.mxu0 0.0
    %291 = vmatpush1.msra.mxu0 0.0
    %292 = vmatprep.subr.mxu0 0.0
    %293 = vmatpush1.msra.mxu0 0.0
    %294 = vmatprep.subr.mxu0 0.0
    %295 = vmatpush1.msra.mxu0 0.0
    %296 = vmatprep.mubr.f32.mxu0 0.0
    %297 = vmatmul.mubr.f32.gmra.mrb[0].mxu0 %v230
    %v298 = vpop.f32.mrb[0].mxu0
    %v299 = vadd.f32 0.0, %v298
    %v300 = vpop.f32.mrb[0].mxu0
    %301 = vdwg.mxu0
    %v302 = vxor.u32 %v299, 2147483648
    %v303 = vmul.f32 %v302, 1.442695
    %v304 = vpow.pop %v303
    %v305 = vadd.f32 %v304, 1.0
    %v306 = vrcp.pop %v305
    %v307 = vmul.f32 1.0, %v306
    %v308 = vmul.f32 %v299, %v307
    %v309 = vld [vmem:[%s2] sm:$0xf]
    %vm310 = vcmask 31744
    %v312 = vsel %vm310, %v308, 0
    %vm314 = vcmask 1043456
    %v316 = vsel %vm314, %v309, 0
    %318 = vmatprep.subr.mxu0 0.0
    %319 = vmatpush1.msra.mxu0 %v316
    %320 = vmatprep.subr.mxu0 0.0
    %321 = vmatpush1.msra.mxu0 0.0
    %322 = vmatprep.subr.mxu0 0.0
    %323 = vmatpush1.msra.mxu0 0.0
    %324 = vmatprep.subr.mxu0 0.0
    %325 = vmatpush1.msra.mxu0 0.0
    %326 = vmatprep.subr.mxu0 0.0
    %327 = vmatpush1.msra.mxu0 0.0
    %328 = vmatprep.subr.mxu0 0.0
    %329 = vmatpush1.msra.mxu0 0.0
    %330 = vmatprep.subr.mxu0 0.0
    %331 = vmatpush1.msra.mxu0 0.0
    %332 = vmatprep.subr.mxu0 0.0
    %333 = vmatpush1.msra.mxu0 0.0
    %334 = vmatprep.subr.mxu0 0.0
    %335 = vmatpush1.msra.mxu0 0.0
    %336 = vmatprep.subr.mxu0 0.0
    %337 = vmatpush1.msra.mxu0 0.0
    %338 = vmatprep.subr.mxu0 0.0
    %339 = vmatpush1.msra.mxu0 0.0
    %340 = vmatprep.subr.mxu0 0.0
    %341 = vmatpush1.msra.mxu0 0.0
    %342 = vmatprep.subr.mxu0 0.0
    %343 = vmatpush1.msra.mxu0 0.0
    %344 = vmatprep.subr.mxu0 0.0
    %345 = vmatpush1.msra.mxu0 0.0
    %346 = vmatprep.subr.mxu0 0.0
    %347 = vmatpush1.msra.mxu0 0.0
    %348 = vmatprep.subr.mxu0 0.0
    %349 = vmatpush1.msra.mxu0 0.0
    %350 = vmatprep.subr.mxu0 0.0
    %351 = vmatpush1.msra.mxu0 0.0
    %352 = vmatprep.subr.mxu0 0.0
    %353 = vmatpush1.msra.mxu0 0.0
    %354 = vmatprep.subr.mxu0 0.0
    %355 = vmatpush1.msra.mxu0 0.0
    %356 = vmatprep.subr.mxu0 0.0
    %357 = vmatpush1.msra.mxu0 0.0
    %358 = vmatprep.subr.mxu0 0.0
    %359 = vmatpush1.msra.mxu0 0.0
    %360 = vmatprep.subr.mxu0 0.0
    %361 = vmatpush1.msra.mxu0 0.0
    %362 = vmatprep.subr.mxu0 0.0
    %363 = vmatpush1.msra.mxu0 0.0
    %364 = vmatprep.subr.mxu0 0.0
    %365 = vmatpush1.msra.mxu0 0.0
    %366 = vmatprep.subr.mxu0 0.0
    %367 = vmatpush1.msra.mxu0 0.0
    %368 = vmatprep.subr.mxu0 0.0
    %369 = vmatpush1.msra.mxu0 0.0
    %370 = vmatprep.subr.mxu0 0.0
    %371 = vmatpush1.msra.mxu0 0.0
    %372 = vmatprep.subr.mxu0 0.0
    %373 = vmatpush1.msra.mxu0 0.0
    %374 = vmatprep.subr.mxu0 0.0
    %375 = vmatpush1.msra.mxu0 0.0
    %376 = vmatprep.subr.mxu0 0.0
    %377 = vmatpush1.msra.mxu0 0.0
    %378 = vmatprep.subr.mxu0 0.0
    %379 = vmatpush1.msra.mxu0 0.0
    %380 = vmatprep.subr.mxu0 0.0
    %381 = vmatpush1.msra.mxu0 0.0
    %382 = vmatprep.mubr.f32.mxu0 0.0
    %383 = vmatmul.mubr.f32.gmra.mrb[0].mxu0 %v312
    %v384 = vpop.f32.mrb[0].mxu0
    %v385 = vadd.f32 0.0, %v384
    %v386 = vpop.f32.mrb[0].mxu0
    %387 = vdwg.mxu0
    %v388 = vxor.u32 %v385, 2147483648
    %v389 = vmul.f32 %v388, 1.442695
    %v390 = vpow.pop %v389
    %v391 = vadd.f32 %v390, 1.0
    %v392 = vrcp.pop %v391
    %v393 = vmul.f32 1.0, %v392
    %v394 = vlaneseq
    %v395 = vshrl.u32 %v394, 7
    %v396 = vsub.s32 0, %v395
    %v397 = vrot.slane %v393, %v396
    %399 = vbcast.lane.b32.xlu0 %v397, 256
    %v400 = vpop.permute.xlu0 %399
    %s402 = sor.u32 256, 8
    %403 = vbcast.lane.b32.xlu0 %v397, %s402
    %v404 = vpop.permute.xlu0 %403
    %s406 = sor.u32 256, 16
    %407 = vbcast.lane.b32.xlu0 %v397, %s406
    %v408 = vpop.permute.xlu0 %407
    %s410 = sor.u32 256, 24
    %411 = vbcast.lane.b32.xlu0 %v397, %s410
    %v412 = vpop.permute.xlu0 %411
    %s414 = sor.u32 256, 32
    %415 = vbcast.lane.b32.xlu0 %v397, %s414
    %v416 = vpop.permute.xlu0 %415
    %s418 = sor.u32 256, 40
    %419 = vbcast.lane.b32.xlu0 %v397, %s418
    %v420 = vpop.permute.xlu0 %419
    %s422 = sor.u32 256, 48
    %423 = vbcast.lane.b32.xlu0 %v397, %s422
    %v424 = vpop.permute.xlu0 %423
    %s426 = sor.u32 256, 56
    %427 = vbcast.lane.b32.xlu0 %v397, %s426
    %v428 = vpop.permute.xlu0 %427
    %v429 = vlaneseq
    %v430 = vshrl.u32 %v429, 7
    %v431 = vsub.s32 1, %v430
    %v432 = vrot.slane %v393, %v431
    %434 = vbcast.lane.b32.xlu0 %v432, 256
    %v435 = vpop.permute.xlu0 %434
    %s437 = sor.u32 256, 8
    %438 = vbcast.lane.b32.xlu0 %v432, %s437
    %v439 = vpop.permute.xlu0 %438
    %s441 = sor.u32 256, 16
    %442 = vbcast.lane.b32.xlu0 %v432, %s441
    %v443 = vpop.permute.xlu0 %442
    %s445 = sor.u32 256, 24
    %446 = vbcast.lane.b32.xlu0 %v432, %s445
    %v447 = vpop.permute.xlu0 %446
    %s449 = sor.u32 256, 32
    %450 = vbcast.lane.b32.xlu0 %v432, %s449
    %v451 = vpop.permute.xlu0 %450
    %s453 = sor.u32 256, 40
    %454 = vbcast.lane.b32.xlu0 %v432, %s453
    %v455 = vpop.permute.xlu0 %454
    %s457 = sor.u32 256, 48
    %458 = vbcast.lane.b32.xlu0 %v432, %s457
    %v459 = vpop.permute.xlu0 %458
    %s461 = sor.u32 256, 56
    %462 = vbcast.lane.b32.xlu0 %v432, %s461
    %v463 = vpop.permute.xlu0 %462
    %v464 = vmul.f32 %v29, %v400
    %v465 = vmul.f32 %v30, %v400
    %v466 = vmul.f32 %v31, %v404
    %v467 = vmul.f32 %v32, %v404
    %v468 = vmul.f32 %v33, %v408
    %v469 = vmul.f32 %v34, %v408
    %v470 = vmul.f32 %v35, %v412
    %v471 = vmul.f32 %v36, %v412
    %v472 = vmul.f32 %v37, %v416
    %v473 = vmul.f32 %v38, %v416
    %v474 = vmul.f32 %v39, %v420
    %v475 = vmul.f32 %v40, %v420
    %v476 = vmul.f32 %v41, %v424
    %v477 = vmul.f32 %v42, %v424
    %v478 = vmul.f32 %v43, %v428
    %v479 = vmul.f32 %v44, %v428
    %v480 = vmul.f32 %v45, %v435
    %v481 = vmul.f32 %v46, %v435
    %v482 = vmul.f32 %v47, %v439
    %v483 = vmul.f32 %v48, %v439
    %v484 = vmul.f32 %v49, %v443
    %v485 = vmul.f32 %v50, %v443
    %v486 = vmul.f32 %v51, %v447
    %v487 = vmul.f32 %v52, %v447
    %v488 = vmul.f32 %v53, %v451
    %v489 = vmul.f32 %v54, %v451
    %v490 = vmul.f32 %v55, %v455
    %v491 = vmul.f32 %v56, %v455
    %v492 = vmul.f32 %v57, %v459
    %v493 = vmul.f32 %v58, %v459
    %v494 = vmul.f32 %v59, %v463
    %v495 = vmul.f32 %v60, %v463
    %496 = vst [vmem:[#allocation5] sm:$0xff] %v464
    %497 = vst [vmem:[#allocation5 + $0x8] sm:$0xff] %v465
    %498 = vst [vmem:[#allocation5 + $0x10] sm:$0xff] %v466
    %499 = vst [vmem:[#allocation5 + $0x18] sm:$0xff] %v467
    %500 = vst [vmem:[#allocation5 + $0x20] sm:$0xff] %v468
    %501 = vst [vmem:[#allocation5 + $0x28] sm:$0xff] %v469
    %502 = vst [vmem:[#allocation5 + $0x30] sm:$0xff] %v470
    %503 = vst [vmem:[#allocation5 + $0x38] sm:$0xff] %v471
    %504 = vst [vmem:[#allocation5 + $0x40] sm:$0xff] %v472
    %505 = vst [vmem:[#allocation5 + $0x48] sm:$0xff] %v473
    %506 = vst [vmem:[#allocation5 + $0x50] sm:$0xff] %v474
    %507 = vst [vmem:[#allocation5 + $0x58] sm:$0xff] %v475
    %508 = vst [vmem:[#allocation5 + $0x60] sm:$0xff] %v476
    %509 = vst [vmem:[#allocation5 + $0x68] sm:$0xff] %v477
    %510 = vst [vmem:[#allocation5 + $0x70] sm:$0xff] %v478
    %511 = vst [vmem:[#allocation5 + $0x78] sm:$0xff] %v479
    %512 = vst [vmem:[#allocation5 + $0x80] sm:$0xff] %v480
    %513 = vst [vmem:[#allocation5 + $0x88] sm:$0xff] %v481
    %514 = vst [vmem:[#allocation5 + $0x90] sm:$0xff] %v482
    %515 = vst [vmem:[#allocation5 + $0x98] sm:$0xff] %v483
    %516 = vst [vmem:[#allocation5 + $0xa0] sm:$0xff] %v484
    %517 = vst [vmem:[#allocation5 + $0xa8] sm:$0xff] %v485
    %518 = vst [vmem:[#allocation5 + $0xb0] sm:$0xff] %v486
    %519 = vst [vmem:[#allocation5 + $0xb8] sm:$0xff] %v487
    %520 = vst [vmem:[#allocation5 + $0xc0] sm:$0xff] %v488
    %521 = vst [vmem:[#allocation5 + $0xc8] sm:$0xff] %v489
    %522 = vst [vmem:[#allocation5 + $0xd0] sm:$0xff] %v490
    %523 = vst [vmem:[#allocation5 + $0xd8] sm:$0xff] %v491
    %524 = vst [vmem:[#allocation5 + $0xe0] sm:$0xff] %v492
    %525 = vst [vmem:[#allocation5 + $0xe8] sm:$0xff] %v493
    %526 = vst [vmem:[#allocation5 + $0xf0] sm:$0xff] %v494
    %527 = vst [vmem:[#allocation5 + $0xf8] sm:$0xff] %v495
    // Predicated region
    $region18: #{tpu_custom_call.1} parent=1 // pred_check
      _
    $region19: #{tpu_custom_call.1} parent=1 // pred_check_branch
      %529 = sbr.rel (0) target = $region21
    $region20: #{tpu_custom_call.1} parent=1 // pred_region
      %s531 = ssub.s32 4096, 4096
      %532 = vsyncadd [#allocation4], %s531
      %s533 = sshll.u32 [#allocation5], 4
      %s534 = int_to_ptr.vmem [resolvable:$true] %s533
      %539 = dma.vmem_to_hbm [thread:$0]  %s534, 4096, %s3, [#allocation4], 256, 256, 16
    $region21: #{tpu_custom_call.1} parent=1 // pred_fallthru
      _
    // Predicated region
    $region22: #{tpu_custom_call.1} parent=1 // pred_check
      _
    $region23: #{tpu_custom_call.1} parent=1 // pred_check_branch
      %541 = sbr.rel (0) target = $region25
    $region24: #{tpu_custom_call.1} parent=1 // pred_region
      %542 = dma.done [#allocation4], 4096
    $region25: #{tpu_custom_call.1} parent=1 // pred_fallthru
      _
    %543 = vsyncpa [#allocation3], 1
    %544 = vsyncpa [#allocation4], 1

</llo_original>
